<compile_context>
chip_gen: v6e
topology: v6e:2x2x1
jax: 0.10.0
libtpu: 0.0.40
codegen_flags: <defaults>
</compile_context>

<pallas_src>
import jax
import jax.numpy as jnp
from jax import lax
from jax.experimental import pallas as pl
from jax.experimental.pallas import tpu as pltpu


def lstm_kernel(mask_ref, x_ref, wx_ref, wh_ref, b_ref, wfc_ref, bfc_ref,
                out_ref):
    B, _ = out_ref.shape               # out is (B, O_pad), lane-dense
    TB, Din = x_ref.shape
    T = TB // B
    H = wh_ref.shape[0]
    G = 4 * H

    # ---- Prologue: hoisted input projection (one well-shaped matmul) ----
    # xw[t*B:(t+1)*B, :] == x_t @ Wx + b for every timestep t.
    xw = (jnp.dot(x_ref[...], wx_ref[...],
                  preferred_element_type=jnp.float32)
          + b_ref[...])                                   # (T*B, 4H) f32

    wh = wh_ref[...]                                      # (H, 4H) bf16, load once

    # Hoisted lane constants: lanes [0,3H) are sigmoid gates (f,i,o),
    # [3H,4H) is the tanh candidate gate C.
    # sigmoid(x) = 0.5 * tanh(0.5 * x) + 0.5  ->  single tanh per gate vreg.
    lane = lax.broadcasted_iota(jnp.int32, (B, G), 1)
    sig_lanes = lane < 3 * H
    act_scale = jnp.where(sig_lanes, 0.5, 1.0).astype(jnp.float32)  # pre & post
    act_shift = jnp.where(sig_lanes, 0.5, 0.0).astype(jnp.float32)

    # ---- Recurrence: state lives in registers, loop fully unrolled ----
    h = jnp.zeros((B, H), jnp.float32)
    c = jnp.zeros((B, H), jnp.float32)

    for t in range(T):                                    # T is static
        nz = mask_ref[t] != 0                             # SMEM scalar read

        gates = (xw[t * B:(t + 1) * B, :]
                 + jnp.dot(h.astype(jnp.bfloat16), wh,
                           preferred_element_type=jnp.float32))    # (B, 4H) f32

        # One EUP tanh + two VPU ops replaces sigmoid(gates)+tanh(gates).
        act = jnp.tanh(gates * act_scale) * act_scale + act_shift

        f = act[:, 0 * H:1 * H]
        i = act[:, 1 * H:2 * H]
        o = act[:, 2 * H:3 * H]
        Cg = act[:, 3 * H:4 * H]

        c_new = f * c + i * Cg
        h_new = o * jnp.tanh(c_new)

        # PyTorch: `if (step_tensor == 0).all(): continue` -> predicated update
        c = jnp.where(nz, c_new, c)
        h = jnp.where(nz, h_new, h)

    # ---- Epilogue: out = softmax(fc(h_T), dim=1) on padded lanes ----
    # Padded classes carry bias -1e30 -> exp underflows to 0, so the softmax
    # over O_pad lanes equals the softmax over the real O classes.
    logits = (jnp.dot(h, wfc_ref[...], preferred_element_type=jnp.float32)
              + bfc_ref[...])                             # (B, O_pad)
    m = jnp.max(logits, axis=1, keepdims=True)
    e = jnp.exp(logits - m)
    denom = jnp.sum(e, axis=1, keepdims=True)
    out_ref[...] = e * pl.reciprocal(denom, approx=True)  # lane-dense store


@jax.jit
def lstm_forward(x_btd, wx, wh, b, wfc, bfc):
    """x_btd: (B, T, Din) float32.  Returns softmax(fc(h_T)) of shape (B, O)."""
    B, T, Din = x_btd.shape
    H = wh.shape[0]
    O = wfc.shape[1]
    O_pad = max(128, ((O + 127) // 128) * 128)            # lane-dense output

    # Per-timestep "all zero" mask computed on the ORIGINAL f32 input
    # (bit-exact zero test, unaffected by the bf16 cast of MXU operands).
    step_nonzero = jnp.any(x_btd != 0.0, axis=(0, 2)).astype(jnp.int32)  # (T,)

    # Time-major + flattened rows so the in-kernel projection is one matmul.
    x_flat = jnp.transpose(x_btd, (1, 0, 2)).reshape(T * B, Din)

    # bf16 MXU operands, f32 accumulation; elementwise stays f32 in-kernel.
    x_flat = x_flat.astype(jnp.bfloat16)
    wx_b = wx.astype(jnp.bfloat16)
    wh_b = wh.astype(jnp.bfloat16)

    # Pad fc weights so the output store is unmasked; padded classes get a
    # -1e30 bias so they contribute exactly 0 to the softmax.
    wfc_pad = jnp.zeros((H, O_pad), jnp.float32).at[:, :O].set(wfc)
    bfc_pad = jnp.full((1, O_pad), -1e30, jnp.float32).at[:, :O].set(bfc)

    out_pad = pl.pallas_call(
        lstm_kernel,
        out_shape=jax.ShapeDtypeStruct((B, O_pad), jnp.float32),
        in_specs=[pl.BlockSpec(memory_space=pltpu.MemorySpace.SMEM)]   # mask
        + [pl.BlockSpec(memory_space=pltpu.MemorySpace.VMEM)] * 6,
        out_specs=pl.BlockSpec(memory_space=pltpu.MemorySpace.VMEM),
    )(step_nonzero, x_flat, wx_b, wh_b, b, wfc_pad, bfc_pad)

    return out_pad[:, :O]


def init_params(key, input_size, hidden_size, output_classes):
    """Deterministic init mimicking nn.Linear's uniform(-1/sqrt(fan_in), ...)."""
    D = input_size + hidden_size
    ks = jax.random.split(key, 10)
    bound_g = 1.0 / jnp.sqrt(D)
    # four gate linears (fl, il, ol, Cl), each (D, H); stack as (D, 4H)
    w_gates = [jax.random.uniform(ks[j], (D, hidden_size), jnp.float32,
                                  -bound_g, bound_g) for j in range(4)]
    b_gates = [jax.random.uniform(ks[4 + j], (hidden_size,), jnp.float32,
                                  -bound_g, bound_g) for j in range(4)]
    W = jnp.concatenate(w_gates, axis=1)                  # (D, 4H)
    wx = W[:input_size, :]                                # (Din, 4H)
    wh = W[input_size:, :]                                # (H, 4H)
    b = jnp.concatenate(b_gates)[None, :]                 # (1, 4H)

    bound_fc = 1.0 / jnp.sqrt(hidden_size)
    wfc = jax.random.uniform(ks[8], (hidden_size, output_classes), jnp.float32,
                             -bound_fc, bound_fc)
    bfc = jax.random.uniform(ks[9], (output_classes,), jnp.float32,
                             -bound_fc, bound_fc)[None, :]
    return wx, wh, b, wfc, bfc


def lstm_ref(x_btd, wx, wh, b, wfc, bfc):
    """Pure-JAX reference of the PyTorch forward (output_last=True).

    Mirrors the kernel's bf16-at-the-dot / f32-accumulate numerics so the
    comparison is tight; uses exact sigmoid/tanh and exact softmax division.
    """
    B, T, _ = x_btd.shape
    H = wh.shape[0]
    wx_b = wx.astype(jnp.bfloat16)
    wh_b = wh.astype(jnp.bfloat16)
    h = jnp.zeros((B, H), jnp.float32)
    c = jnp.zeros((B, H), jnp.float32)
    for t in range(T):
        xt = x_btd[:, t, :]
        nz = jnp.any(xt != 0.0)
        xwt = jnp.dot(xt.astype(jnp.bfloat16), wx_b,
                      preferred_element_type=jnp.float32) + b
        gates = xwt + jnp.dot(h.astype(jnp.bfloat16), wh_b,
                              preferred_element_type=jnp.float32)
        f = jax.nn.sigmoid(gates[:, 0 * H:1 * H])
        i = jax.nn.sigmoid(gates[:, 1 * H:2 * H])
        o = jax.nn.sigmoid(gates[:, 2 * H:3 * H])
        C = jnp.tanh(gates[:, 3 * H:4 * H])
        c_new = f * c + i * C
        h_new = o * jnp.tanh(c_new)
        c = jnp.where(nz, c_new, c)
        h = jnp.where(nz, h_new, h)
    logits = jnp.dot(h, wfc, preferred_element_type=jnp.float32) + bfc
    return jax.nn.softmax(logits, axis=1)


if __name__ == "__main__":
    # small shapes consistent with the module's forward
    batch, time_step, input_size = 8, 8, 16
    hidden_size = 32          # cell_size == hidden_size in this module's usage
    output_classes = 4        # >1 so softmax(dim=1) after squeeze is well-defined

    key = jax.random.PRNGKey(0)
    k_x, k_p = jax.random.split(key)
    x = jax.random.normal(k_x, (batch, time_step, input_size), jnp.float32)
    # make one timestep all-zero to exercise the "skip" branch
    x = x.at[:, 3, :].set(0.0)

    wx, wh, b, wfc, bfc = init_params(k_p, input_size, hidden_size,
                                      output_classes)

    out = lstm_forward(x, wx, wh, b, wfc, bfc)
    out = jax.block_until_ready(out)

    ref = lstm_ref(x, wx, wh, b, wfc, bfc)
    assert out.shape == (batch, output_classes)
    # tolerance absorbs the approx-reciprocal softmax and tanh-based sigmoid
    assert jnp.allclose(out, ref, rtol=1e-3, atol=1e-3), (
        f"max abs err {jnp.max(jnp.abs(out - ref))}")
    # softmax rows should still sum to ~1 on the real classes
    assert jnp.allclose(jnp.sum(out, axis=1), 1.0, atol=2e-3)
    print("KERNEL_OK")
</pallas_src>

<mosaic_0001>
module attributes {stable_mosaic.version = 11 : i64} {
  func.func @lstm_kernel(%arg0: memref<8xi32, #tpu.memory_space<smem>>, %arg1: memref<64x16xbf16, #tpu.memory_space<vmem>>, %arg2: memref<16x128xbf16, #tpu.memory_space<vmem>>, %arg3: memref<32x128xbf16, #tpu.memory_space<vmem>>, %arg4: memref<1x128xf32, #tpu.memory_space<vmem>>, %arg5: memref<32x128xf32, #tpu.memory_space<vmem>>, %arg6: memref<1x128xf32, #tpu.memory_space<vmem>>, %arg7: memref<8x128xf32, #tpu.memory_space<vmem>>) attributes {dimension_semantics = [], scalar_prefetch = 0 : i64, scratch_operands = 0 : i64, tpu.core_type = #tpu.core_type<tc>} {
    %c0 = arith.constant 0 : index
    %c0_0 = arith.constant 0 : index
    %0 = vector.load %arg1[%c0, %c0_0] : memref<64x16xbf16, #tpu.memory_space<vmem>>, vector<64x16xbf16>
    %c0_1 = arith.constant 0 : index
    %c0_2 = arith.constant 0 : index
    %1 = vector.load %arg2[%c0_1, %c0_2] : memref<16x128xbf16, #tpu.memory_space<vmem>>, vector<16x128xbf16>
    %cst = arith.constant dense<0.000000e+00> : vector<64x128xf32>
    %2 = tpu.matmul %0, %1, %cst {dimension_numbers = #tpu.dot_dimension_numbers<[1], [0], [0], [1], [0, 0, 1, 1], [], []>} : vector<64x16xbf16>, vector<16x128xbf16>, vector<64x128xf32> -> vector<64x128xf32>
    %c0_3 = arith.constant 0 : index
    %c0_4 = arith.constant 0 : index
    %3 = vector.load %arg4[%c0_3, %c0_4] : memref<1x128xf32, #tpu.memory_space<vmem>>, vector<1x128xf32>
    %4 = vector.broadcast %3 : vector<1x128xf32> to vector<64x128xf32>
    %5 = arith.addf %2, %4 : vector<64x128xf32>
    %c0_5 = arith.constant 0 : index
    %c0_6 = arith.constant 0 : index
    %6 = vector.load %arg3[%c0_5, %c0_6] : memref<32x128xbf16, #tpu.memory_space<vmem>>, vector<32x128xbf16>
    %7 = tpu.iota {dimensions = array<i32: 1>} : vector<8x128xi32>
    %c96_i32 = arith.constant 96 : i32
    %8 = vector.broadcast %c96_i32 : i32 to vector<8x128xi32>
    %9 = arith.cmpi slt, %7, %8 : vector<8x128xi32>
    %cst_7 = arith.constant 5.000000e-01 : f32
    %cst_8 = arith.constant 1.000000e+00 : f32
    %10 = vector.broadcast %cst_7 : f32 to vector<8x128xf32>
    %11 = vector.broadcast %cst_8 : f32 to vector<8x128xf32>
    %12 = arith.select %9, %10, %11 : vector<8x128xi1>, vector<8x128xf32>
    %cst_9 = arith.constant 5.000000e-01 : f32
    %cst_10 = arith.constant 0.000000e+00 : f32
    %13 = vector.broadcast %cst_9 : f32 to vector<8x128xf32>
    %14 = vector.broadcast %cst_10 : f32 to vector<8x128xf32>
    %15 = arith.select %9, %13, %14 : vector<8x128xi1>, vector<8x128xf32>
    %cst_11 = arith.constant 0.000000e+00 : f32
    %16 = vector.broadcast %cst_11 : f32 to vector<8x32xf32>
    %cst_12 = arith.constant 0.000000e+00 : f32
    %17 = vector.broadcast %cst_12 : f32 to vector<8x32xf32>
    %c0_13 = arith.constant 0 : index
    %18 = memref.load %arg0[%c0_13] : memref<8xi32, #tpu.memory_space<smem>>
    %c0_i32 = arith.constant 0 : i32
    %19 = arith.cmpi ne, %18, %c0_i32 : i32
    %20 = vector.extract_strided_slice %5 {offsets = [0, 0], sizes = [8, 128], strides = [1, 1]} : vector<64x128xf32> to vector<8x128xf32>
    %21 = arith.truncf %16 : vector<8x32xf32> to vector<8x32xbf16>
    %cst_14 = arith.constant dense<0.000000e+00> : vector<8x128xf32>
    %22 = tpu.matmul %21, %6, %cst_14 {dimension_numbers = #tpu.dot_dimension_numbers<[1], [0], [0], [1], [0, 0, 1, 1], [], []>} : vector<8x32xbf16>, vector<32x128xbf16>, vector<8x128xf32> -> vector<8x128xf32>
    %23 = arith.addf %20, %22 : vector<8x128xf32>
    %24 = arith.mulf %23, %12 : vector<8x128xf32>
    %25 = math.tanh %24 : vector<8x128xf32>
    %26 = arith.mulf %25, %12 : vector<8x128xf32>
    %27 = arith.addf %26, %15 : vector<8x128xf32>
    %28 = vector.extract_strided_slice %27 {offsets = [0, 0], sizes = [8, 32], strides = [1, 1]} : vector<8x128xf32> to vector<8x32xf32>
    %29 = vector.extract_strided_slice %27 {offsets = [0, 32], sizes = [8, 32], strides = [1, 1]} : vector<8x128xf32> to vector<8x32xf32>
    %30 = vector.extract_strided_slice %27 {offsets = [0, 64], sizes = [8, 32], strides = [1, 1]} : vector<8x128xf32> to vector<8x32xf32>
    %31 = vector.extract_strided_slice %27 {offsets = [0, 96], sizes = [8, 32], strides = [1, 1]} : vector<8x128xf32> to vector<8x32xf32>
    %32 = arith.mulf %28, %17 : vector<8x32xf32>
    %33 = arith.mulf %29, %31 : vector<8x32xf32>
    %34 = arith.addf %32, %33 : vector<8x32xf32>
    %35 = math.tanh %34 : vector<8x32xf32>
    %36 = arith.mulf %30, %35 : vector<8x32xf32>
    %37 = arith.select %19, %34, %17 : vector<8x32xf32>
    %38 = arith.select %19, %36, %16 : vector<8x32xf32>
    %c1 = arith.constant 1 : index
    %39 = memref.load %arg0[%c1] : memref<8xi32, #tpu.memory_space<smem>>
    %c0_i32_15 = arith.constant 0 : i32
    %40 = arith.cmpi ne, %39, %c0_i32_15 : i32
    %41 = vector.extract_strided_slice %5 {offsets = [8, 0], sizes = [8, 128], strides = [1, 1]} : vector<64x128xf32> to vector<8x128xf32>
    %42 = arith.truncf %38 : vector<8x32xf32> to vector<8x32xbf16>
    %cst_16 = arith.constant dense<0.000000e+00> : vector<8x128xf32>
    %43 = tpu.matmul %42, %6, %cst_16 {dimension_numbers = #tpu.dot_dimension_numbers<[1], [0], [0], [1], [0, 0, 1, 1], [], []>} : vector<8x32xbf16>, vector<32x128xbf16>, vector<8x128xf32> -> vector<8x128xf32>
    %44 = arith.addf %41, %43 : vector<8x128xf32>
    %45 = arith.mulf %44, %12 : vector<8x128xf32>
    %46 = math.tanh %45 : vector<8x128xf32>
    %47 = arith.mulf %46, %12 : vector<8x128xf32>
    %48 = arith.addf %47, %15 : vector<8x128xf32>
    %49 = vector.extract_strided_slice %48 {offsets = [0, 0], sizes = [8, 32], strides = [1, 1]} : vector<8x128xf32> to vector<8x32xf32>
    %50 = vector.extract_strided_slice %48 {offsets = [0, 32], sizes = [8, 32], strides = [1, 1]} : vector<8x128xf32> to vector<8x32xf32>
    %51 = vector.extract_strided_slice %48 {offsets = [0, 64], sizes = [8, 32], strides = [1, 1]} : vector<8x128xf32> to vector<8x32xf32>
    %52 = vector.extract_strided_slice %48 {offsets = [0, 96], sizes = [8, 32], strides = [1, 1]} : vector<8x128xf32> to vector<8x32xf32>
    %53 = arith.mulf %49, %37 : vector<8x32xf32>
    %54 = arith.mulf %50, %52 : vector<8x32xf32>
    %55 = arith.addf %53, %54 : vector<8x32xf32>
    %56 = math.tanh %55 : vector<8x32xf32>
    %57 = arith.mulf %51, %56 : vector<8x32xf32>
    %58 = arith.select %40, %55, %37 : vector<8x32xf32>
    %59 = arith.select %40, %57, %38 : vector<8x32xf32>
    %c2 = arith.constant 2 : index
    %60 = memref.load %arg0[%c2] : memref<8xi32, #tpu.memory_space<smem>>
    %c0_i32_17 = arith.constant 0 : i32
    %61 = arith.cmpi ne, %60, %c0_i32_17 : i32
    %62 = vector.extract_strided_slice %5 {offsets = [16, 0], sizes = [8, 128], strides = [1, 1]} : vector<64x128xf32> to vector<8x128xf32>
    %63 = arith.truncf %59 : vector<8x32xf32> to vector<8x32xbf16>
    %cst_18 = arith.constant dense<0.000000e+00> : vector<8x128xf32>
    %64 = tpu.matmul %63, %6, %cst_18 {dimension_numbers = #tpu.dot_dimension_numbers<[1], [0], [0], [1], [0, 0, 1, 1], [], []>} : vector<8x32xbf16>, vector<32x128xbf16>, vector<8x128xf32> -> vector<8x128xf32>
    %65 = arith.addf %62, %64 : vector<8x128xf32>
    %66 = arith.mulf %65, %12 : vector<8x128xf32>
    %67 = math.tanh %66 : vector<8x128xf32>
    %68 = arith.mulf %67, %12 : vector<8x128xf32>
    %69 = arith.addf %68, %15 : vector<8x128xf32>
    %70 = vector.extract_strided_slice %69 {offsets = [0, 0], sizes = [8, 32], strides = [1, 1]} : vector<8x128xf32> to vector<8x32xf32>
    %71 = vector.extract_strided_slice %69 {offsets = [0, 32], sizes = [8, 32], strides = [1, 1]} : vector<8x128xf32> to vector<8x32xf32>
    %72 = vector.extract_strided_slice %69 {offsets = [0, 64], sizes = [8, 32], strides = [1, 1]} : vector<8x128xf32> to vector<8x32xf32>
    %73 = vector.extract_strided_slice %69 {offsets = [0, 96], sizes = [8, 32], strides = [1, 1]} : vector<8x128xf32> to vector<8x32xf32>
    %74 = arith.mulf %70, %58 : vector<8x32xf32>
    %75 = arith.mulf %71, %73 : vector<8x32xf32>
    %76 = arith.addf %74, %75 : vector<8x32xf32>
    %77 = math.tanh %76 : vector<8x32xf32>
    %78 = arith.mulf %72, %77 : vector<8x32xf32>
    %79 = arith.select %61, %76, %58 : vector<8x32xf32>
    %80 = arith.select %61, %78, %59 : vector<8x32xf32>
    %c3 = arith.constant 3 : index
    %81 = memref.load %arg0[%c3] : memref<8xi32, #tpu.memory_space<smem>>
    %c0_i32_19 = arith.constant 0 : i32
    %82 = arith.cmpi ne, %81, %c0_i32_19 : i32
    %83 = vector.extract_strided_slice %5 {offsets = [24, 0], sizes = [8, 128], strides = [1, 1]} : vector<64x128xf32> to vector<8x128xf32>
    %84 = arith.truncf %80 : vector<8x32xf32> to vector<8x32xbf16>
    %cst_20 = arith.constant dense<0.000000e+00> : vector<8x128xf32>
    %85 = tpu.matmul %84, %6, %cst_20 {dimension_numbers = #tpu.dot_dimension_numbers<[1], [0], [0], [1], [0, 0, 1, 1], [], []>} : vector<8x32xbf16>, vector<32x128xbf16>, vector<8x128xf32> -> vector<8x128xf32>
    %86 = arith.addf %83, %85 : vector<8x128xf32>
    %87 = arith.mulf %86, %12 : vector<8x128xf32>
    %88 = math.tanh %87 : vector<8x128xf32>
    %89 = arith.mulf %88, %12 : vector<8x128xf32>
    %90 = arith.addf %89, %15 : vector<8x128xf32>
    %91 = vector.extract_strided_slice %90 {offsets = [0, 0], sizes = [8, 32], strides = [1, 1]} : vector<8x128xf32> to vector<8x32xf32>
    %92 = vector.extract_strided_slice %90 {offsets = [0, 32], sizes = [8, 32], strides = [1, 1]} : vector<8x128xf32> to vector<8x32xf32>
    %93 = vector.extract_strided_slice %90 {offsets = [0, 64], sizes = [8, 32], strides = [1, 1]} : vector<8x128xf32> to vector<8x32xf32>
    %94 = vector.extract_strided_slice %90 {offsets = [0, 96], sizes = [8, 32], strides = [1, 1]} : vector<8x128xf32> to vector<8x32xf32>
    %95 = arith.mulf %91, %79 : vector<8x32xf32>
    %96 = arith.mulf %92, %94 : vector<8x32xf32>
    %97 = arith.addf %95, %96 : vector<8x32xf32>
    %98 = math.tanh %97 : vector<8x32xf32>
    %99 = arith.mulf %93, %98 : vector<8x32xf32>
    %100 = arith.select %82, %97, %79 : vector<8x32xf32>
    %101 = arith.select %82, %99, %80 : vector<8x32xf32>
    %c4 = arith.constant 4 : index
    %102 = memref.load %arg0[%c4] : memref<8xi32, #tpu.memory_space<smem>>
    %c0_i32_21 = arith.constant 0 : i32
    %103 = arith.cmpi ne, %102, %c0_i32_21 : i32
    %104 = vector.extract_strided_slice %5 {offsets = [32, 0], sizes = [8, 128], strides = [1, 1]} : vector<64x128xf32> to vector<8x128xf32>
    %105 = arith.truncf %101 : vector<8x32xf32> to vector<8x32xbf16>
    %cst_22 = arith.constant dense<0.000000e+00> : vector<8x128xf32>
    %106 = tpu.matmul %105, %6, %cst_22 {dimension_numbers = #tpu.dot_dimension_numbers<[1], [0], [0], [1], [0, 0, 1, 1], [], []>} : vector<8x32xbf16>, vector<32x128xbf16>, vector<8x128xf32> -> vector<8x128xf32>
    %107 = arith.addf %104, %106 : vector<8x128xf32>
    %108 = arith.mulf %107, %12 : vector<8x128xf32>
    %109 = math.tanh %108 : vector<8x128xf32>
    %110 = arith.mulf %109, %12 : vector<8x128xf32>
    %111 = arith.addf %110, %15 : vector<8x128xf32>
    %112 = vector.extract_strided_slice %111 {offsets = [0, 0], sizes = [8, 32], strides = [1, 1]} : vector<8x128xf32> to vector<8x32xf32>
    %113 = vector.extract_strided_slice %111 {offsets = [0, 32], sizes = [8, 32], strides = [1, 1]} : vector<8x128xf32> to vector<8x32xf32>
    %114 = vector.extract_strided_slice %111 {offsets = [0, 64], sizes = [8, 32], strides = [1, 1]} : vector<8x128xf32> to vector<8x32xf32>
    %115 = vector.extract_strided_slice %111 {offsets = [0, 96], sizes = [8, 32], strides = [1, 1]} : vector<8x128xf32> to vector<8x32xf32>
    %116 = arith.mulf %112, %100 : vector<8x32xf32>
    %117 = arith.mulf %113, %115 : vector<8x32xf32>
    %118 = arith.addf %116, %117 : vector<8x32xf32>
    %119 = math.tanh %118 : vector<8x32xf32>
    %120 = arith.mulf %114, %119 : vector<8x32xf32>
    %121 = arith.select %103, %118, %100 : vector<8x32xf32>
    %122 = arith.select %103, %120, %101 : vector<8x32xf32>
    %c5 = arith.constant 5 : index
    %123 = memref.load %arg0[%c5] : memref<8xi32, #tpu.memory_space<smem>>
    %c0_i32_23 = arith.constant 0 : i32
    %124 = arith.cmpi ne, %123, %c0_i32_23 : i32
    %125 = vector.extract_strided_slice %5 {offsets = [40, 0], sizes = [8, 128], strides = [1, 1]} : vector<64x128xf32> to vector<8x128xf32>
    %126 = arith.truncf %122 : vector<8x32xf32> to vector<8x32xbf16>
    %cst_24 = arith.constant dense<0.000000e+00> : vector<8x128xf32>
    %127 = tpu.matmul %126, %6, %cst_24 {dimension_numbers = #tpu.dot_dimension_numbers<[1], [0], [0], [1], [0, 0, 1, 1], [], []>} : vector<8x32xbf16>, vector<32x128xbf16>, vector<8x128xf32> -> vector<8x128xf32>
    %128 = arith.addf %125, %127 : vector<8x128xf32>
    %129 = arith.mulf %128, %12 : vector<8x128xf32>
    %130 = math.tanh %129 : vector<8x128xf32>
    %131 = arith.mulf %130, %12 : vector<8x128xf32>
    %132 = arith.addf %131, %15 : vector<8x128xf32>
    %133 = vector.extract_strided_slice %132 {offsets = [0, 0], sizes = [8, 32], strides = [1, 1]} : vector<8x128xf32> to vector<8x32xf32>
    %134 = vector.extract_strided_slice %132 {offsets = [0, 32], sizes = [8, 32], strides = [1, 1]} : vector<8x128xf32> to vector<8x32xf32>
    %135 = vector.extract_strided_slice %132 {offsets = [0, 64], sizes = [8, 32], strides = [1, 1]} : vector<8x128xf32> to vector<8x32xf32>
    %136 = vector.extract_strided_slice %132 {offsets = [0, 96], sizes = [8, 32], strides = [1, 1]} : vector<8x128xf32> to vector<8x32xf32>
    %137 = arith.mulf %133, %121 : vector<8x32xf32>
    %138 = arith.mulf %134, %136 : vector<8x32xf32>
    %139 = arith.addf %137, %138 : vector<8x32xf32>
    %140 = math.tanh %139 : vector<8x32xf32>
    %141 = arith.mulf %135, %140 : vector<8x32xf32>
    %142 = arith.select %124, %139, %121 : vector<8x32xf32>
    %143 = arith.select %124, %141, %122 : vector<8x32xf32>
    %c6 = arith.constant 6 : index
    %144 = memref.load %arg0[%c6] : memref<8xi32, #tpu.memory_space<smem>>
    %c0_i32_25 = arith.constant 0 : i32
    %145 = arith.cmpi ne, %144, %c0_i32_25 : i32
    %146 = vector.extract_strided_slice %5 {offsets = [48, 0], sizes = [8, 128], strides = [1, 1]} : vector<64x128xf32> to vector<8x128xf32>
    %147 = arith.truncf %143 : vector<8x32xf32> to vector<8x32xbf16>
    %cst_26 = arith.constant dense<0.000000e+00> : vector<8x128xf32>
    %148 = tpu.matmul %147, %6, %cst_26 {dimension_numbers = #tpu.dot_dimension_numbers<[1], [0], [0], [1], [0, 0, 1, 1], [], []>} : vector<8x32xbf16>, vector<32x128xbf16>, vector<8x128xf32> -> vector<8x128xf32>
    %149 = arith.addf %146, %148 : vector<8x128xf32>
    %150 = arith.mulf %149, %12 : vector<8x128xf32>
    %151 = math.tanh %150 : vector<8x128xf32>
    %152 = arith.mulf %151, %12 : vector<8x128xf32>
    %153 = arith.addf %152, %15 : vector<8x128xf32>
    %154 = vector.extract_strided_slice %153 {offsets = [0, 0], sizes = [8, 32], strides = [1, 1]} : vector<8x128xf32> to vector<8x32xf32>
    %155 = vector.extract_strided_slice %153 {offsets = [0, 32], sizes = [8, 32], strides = [1, 1]} : vector<8x128xf32> to vector<8x32xf32>
    %156 = vector.extract_strided_slice %153 {offsets = [0, 64], sizes = [8, 32], strides = [1, 1]} : vector<8x128xf32> to vector<8x32xf32>
    %157 = vector.extract_strided_slice %153 {offsets = [0, 96], sizes = [8, 32], strides = [1, 1]} : vector<8x128xf32> to vector<8x32xf32>
    %158 = arith.mulf %154, %142 : vector<8x32xf32>
    %159 = arith.mulf %155, %157 : vector<8x32xf32>
    %160 = arith.addf %158, %159 : vector<8x32xf32>
    %161 = math.tanh %160 : vector<8x32xf32>
    %162 = arith.mulf %156, %161 : vector<8x32xf32>
    %163 = arith.select %145, %160, %142 : vector<8x32xf32>
    %164 = arith.select %145, %162, %143 : vector<8x32xf32>
    %c7 = arith.constant 7 : index
    %165 = memref.load %arg0[%c7] : memref<8xi32, #tpu.memory_space<smem>>
    %c0_i32_27 = arith.constant 0 : i32
    %166 = arith.cmpi ne, %165, %c0_i32_27 : i32
    %167 = vector.extract_strided_slice %5 {offsets = [56, 0], sizes = [8, 128], strides = [1, 1]} : vector<64x128xf32> to vector<8x128xf32>
    %168 = arith.truncf %164 : vector<8x32xf32> to vector<8x32xbf16>
    %cst_28 = arith.constant dense<0.000000e+00> : vector<8x128xf32>
    %169 = tpu.matmul %168, %6, %cst_28 {dimension_numbers = #tpu.dot_dimension_numbers<[1], [0], [0], [1], [0, 0, 1, 1], [], []>} : vector<8x32xbf16>, vector<32x128xbf16>, vector<8x128xf32> -> vector<8x128xf32>
    %170 = arith.addf %167, %169 : vector<8x128xf32>
    %171 = arith.mulf %170, %12 : vector<8x128xf32>
    %172 = math.tanh %171 : vector<8x128xf32>
    %173 = arith.mulf %172, %12 : vector<8x128xf32>
    %174 = arith.addf %173, %15 : vector<8x128xf32>
    %175 = vector.extract_strided_slice %174 {offsets = [0, 0], sizes = [8, 32], strides = [1, 1]} : vector<8x128xf32> to vector<8x32xf32>
    %176 = vector.extract_strided_slice %174 {offsets = [0, 32], sizes = [8, 32], strides = [1, 1]} : vector<8x128xf32> to vector<8x32xf32>
    %177 = vector.extract_strided_slice %174 {offsets = [0, 64], sizes = [8, 32], strides = [1, 1]} : vector<8x128xf32> to vector<8x32xf32>
    %178 = vector.extract_strided_slice %174 {offsets = [0, 96], sizes = [8, 32], strides = [1, 1]} : vector<8x128xf32> to vector<8x32xf32>
    %179 = arith.mulf %175, %163 : vector<8x32xf32>
    %180 = arith.mulf %176, %178 : vector<8x32xf32>
    %181 = arith.addf %179, %180 : vector<8x32xf32>
    %182 = math.tanh %181 : vector<8x32xf32>
    %183 = arith.mulf %177, %182 : vector<8x32xf32>
    %184 = arith.select %166, %183, %164 : vector<8x32xf32>
    %c0_29 = arith.constant 0 : index
    %c0_30 = arith.constant 0 : index
    %185 = vector.load %arg5[%c0_29, %c0_30] : memref<32x128xf32, #tpu.memory_space<vmem>>, vector<32x128xf32>
    %cst_31 = arith.constant dense<0.000000e+00> : vector<8x128xf32>
    %186 = tpu.matmul %184, %185, %cst_31 {dimension_numbers = #tpu.dot_dimension_numbers<[1], [0], [0], [1], [0, 0, 1, 1], [], []>} : vector<8x32xf32>, vector<32x128xf32>, vector<8x128xf32> -> vector<8x128xf32>
    %c0_32 = arith.constant 0 : index
    %c0_33 = arith.constant 0 : index
    %187 = vector.load %arg6[%c0_32, %c0_33] : memref<1x128xf32, #tpu.memory_space<vmem>>, vector<1x128xf32>
    %188 = vector.broadcast %187 : vector<1x128xf32> to vector<8x128xf32>
    %189 = arith.addf %186, %188 : vector<8x128xf32>
    %cst_34 = arith.constant dense<0xFF800000> : vector<8xf32>
    %190 = vector.multi_reduction <maximumf>, %189, %cst_34 [1] : vector<8x128xf32> to vector<8xf32>
    %191 = vector.shape_cast %190 : vector<8xf32> to vector<8x1xf32>
    %192 = vector.broadcast %191 : vector<8x1xf32> to vector<8x128xf32>
    %193 = arith.subf %189, %192 : vector<8x128xf32>
    %194 = math.exp %193 : vector<8x128xf32>
    %cst_35 = arith.constant dense<0.000000e+00> : vector<8xf32>
    %195 = vector.multi_reduction <add>, %194, %cst_35 [1] : vector<8x128xf32> to vector<8xf32>
    %196 = vector.shape_cast %195 : vector<8xf32> to vector<8x1xf32>
    %197 = tpu.reciprocal %196 {approx = true} : vector<8x1xf32> -> vector<8x1xf32>
    %198 = vector.broadcast %197 : vector<8x1xf32> to vector<8x128xf32>
    %199 = arith.mulf %194, %198 : vector<8x128xf32>
    %c0_36 = arith.constant 0 : index
    %c0_37 = arith.constant 0 : index
    %200 = vector.load %arg7[%c0_36, %c0_37] : memref<8x128xf32, #tpu.memory_space<vmem>>, vector<8x128xf32>
    tpu.vector_store %arg7[%c0_36, %c0_37], %199 {strides = array<i32>} : memref<8x128xf32, #tpu.memory_space<vmem>>, vector<8x128xf32>,
    return
  }
}

</mosaic_0001>

<llo_original>
// kernel: lstm_forward.1
$region0: #{lstm_forward.1}
  #allocation0 [shape = 'u32[]', space=smem, size = 0x4, offset = 0x4, fixed_abs, tag = 'smem constant byte address 0x4 - core index']
  #allocation1 [shape = 'u32[144,128]{1,0:T(1,128)}', space=vmem, size = 0x12000, scoped, tag = 'internal scratch']
  %s0 = inlined_call_operand.vmem [shape: s32[8], index: 0, kind: input, shape index: {}]
  %s1 = inlined_call_operand.vmem [shape: bf16[64,16], index: 1, kind: input, shape index: {}]
  %s2 = inlined_call_operand.vmem [shape: bf16[16,128], index: 2, kind: input, shape index: {}]
  %s3 = inlined_call_operand.vmem [shape: bf16[32,128], index: 3, kind: input, shape index: {}]
  %s4 = inlined_call_operand.vmem [shape: f32[1,128], index: 4, kind: input, shape index: {}]
  %s5 = inlined_call_operand.vmem [shape: f32[32,128], index: 5, kind: input, shape index: {}]
  %s6 = inlined_call_operand.vmem [shape: f32[1,128], index: 6, kind: input, shape index: {}]
  %s7 = inlined_call_operand.vmem [shape: f32[8,128], index: 7, kind: output, shape index: {}]
  %s8 = sld [smem:[#allocation0]]
  $region42: #{lstm_forward.1} parent=0
    _
  %s10 = ssub.s32 1, %s8
  %s11 = scalar_select 0, %s10, %s8
  $region1: #{lstm_forward.1} parent=0
    #allocation2 [shape = 'u8[512]{0}', space=smem, size = 0x200, scoped, tag = 'input window, operand 0, single buffered']
    #allocation3 [shape = 's32[1]{0}', space=sflag, size = 0x4, scoped, tag = 'scoped memory for lstm_forward.1']
    %12 = vsyncpa [#allocation3], 0
    // Predicated region
    $region2: #{lstm_forward.1} parent=1 // pred_check
      _
    $region3: #{lstm_forward.1} parent=1 // pred_check_branch
      %14 = sbr.rel (0) target = $region5
    $region4: #{lstm_forward.1} parent=1 // pred_region
      %s16 = ssub.s32 16, 16
      %17 = vsyncadd [#allocation3], %s16
      %s19 = sshll.u32 %s0, 4
      %s20 = int_to_ptr.vmem [resolvable:$true] %s19
      %22 = dma.vmem_to_smem %s20, 16, [#allocation2], [#allocation3]
    $region5: #{lstm_forward.1} parent=1 // pred_fallthru
      _
    // Predicated region
    $region6: #{lstm_forward.1} parent=1 // pred_check
      _
    $region7: #{lstm_forward.1} parent=1 // pred_check_branch
      %24 = sbr.rel (0) target = $region9
    $region8: #{lstm_forward.1} parent=1 // pred_region
      _
    $region9: #{lstm_forward.1} parent=1 // pred_fallthru
      _
    // Predicated region
    $region10: #{lstm_forward.1} parent=1 // pred_check
      _
    $region11: #{lstm_forward.1} parent=1 // pred_check_branch
      %26 = sbr.rel (0) target = $region13
    $region12: #{lstm_forward.1} parent=1 // pred_region
      _
    $region13: #{lstm_forward.1} parent=1 // pred_fallthru
      _
    // Predicated region
    $region14: #{lstm_forward.1} parent=1 // pred_check
      _
    $region15: #{lstm_forward.1} parent=1 // pred_check_branch
      %28 = sbr.rel (0) target = $region17
    $region16: #{lstm_forward.1} parent=1 // pred_region
      _
    $region17: #{lstm_forward.1} parent=1 // pred_fallthru
      _
    // Predicated region
    $region18: #{lstm_forward.1} parent=1 // pred_check
      _
    $region19: #{lstm_forward.1} parent=1 // pred_check_branch
      %30 = sbr.rel (0) target = $region21
    $region20: #{lstm_forward.1} parent=1 // pred_region
      _
    $region21: #{lstm_forward.1} parent=1 // pred_fallthru
      _
    // Predicated region
    $region22: #{lstm_forward.1} parent=1 // pred_check
      _
    $region23: #{lstm_forward.1} parent=1 // pred_check_branch
      %32 = sbr.rel (0) target = $region25
    $region24: #{lstm_forward.1} parent=1 // pred_region
      _
    $region25: #{lstm_forward.1} parent=1 // pred_fallthru
      _
    // Predicated region
    $region26: #{lstm_forward.1} parent=1 // pred_check
      _
    $region27: #{lstm_forward.1} parent=1 // pred_check_branch
      %34 = sbr.rel (0) target = $region29
    $region28: #{lstm_forward.1} parent=1 // pred_region
      _
    $region29: #{lstm_forward.1} parent=1 // pred_fallthru
      _
    // Predicated region
    $region30: #{lstm_forward.1} parent=1 // pred_check
      _
    $region31: #{lstm_forward.1} parent=1 // pred_check_branch
      %36 = sbr.rel (0) target = $region33
    $region32: #{lstm_forward.1} parent=1 // pred_region
      %37 = dma.done [#allocation3], 16
    $region33: #{lstm_forward.1} parent=1 // pred_fallthru
      _
    %38 = sfence
    %v40 = vld [vmem:[%s1] sm:$0xf]
    %v41 = vld [vmem:[%s1 + $0x4] sm:$0xf]
    %v42 = vld [vmem:[%s1 + $0x8] sm:$0xf]
    %v43 = vld [vmem:[%s1 + $0xc] sm:$0xf]
    %v44 = vld [vmem:[%s1 + $0x10] sm:$0xf]
    %v45 = vld [vmem:[%s1 + $0x14] sm:$0xf]
    %v46 = vld [vmem:[%s1 + $0x18] sm:$0xf]
    %v47 = vld [vmem:[%s1 + $0x1c] sm:$0xf]
    %v48 = vld [vmem:[%s2] sm:$0xf]
    %v49 = vld [vmem:[%s2 + $0x4] sm:$0xf]
    %v50 = vld [vmem:[%s4] sm:$0x1]
    %v52 = vlaneseq
    %v53 = vshrl.u32 %v52, 7
    %v54 = vsub.s32 0, %v53
    %v55 = vrot.slane %v50, %v54
    %v65 = vunpack.c.l.b16 %v40
    %v66 = vunpack.c.l.b16 %v41
    %v67 = vunpack.c.l.b16 %v42
    %v68 = vunpack.c.l.b16 %v43
    %v69 = vunpack.c.l.b16 %v44
    %v70 = vunpack.c.l.b16 %v45
    %v71 = vunpack.c.l.b16 %v46
    %v72 = vunpack.c.l.b16 %v47
    %v73 = vpack.c.b16 %v66, %v65
    %v74 = vpack.c.b16 %v68, %v67
    %v75 = vpack.c.b16 %v70, %v69
    %v76 = vpack.c.b16 %v72, %v71
    %v79 = vunpack.c.l.b16 %v48
    %v80 = vunpack.c.l.b16 %v49
    %v81 = vpack.c.b16 %v80, %v79
    %vm83 = vcmask 130048
    %v85 = vsel %vm83, %v73, 0
    %v88 = vsel %vm83, %v74, 0
    %v91 = vsel %vm83, %v75, 0
    %v94 = vsel %vm83, %v76, 0
    %96 = vmatprep.subr.bf16.mxu0 0
    %97 = vmatpush1.bf16.msra.mxu0 0
    %98 = vmatprep.subr.bf16.mxu0 0
    %99 = vmatpush1.bf16.msra.mxu0 0
    %100 = vmatprep.subr.bf16.mxu0 0
    %101 = vmatpush1.bf16.msra.mxu0 0
    %102 = vmatprep.subr.bf16.mxu0 0
    %103 = vmatpush1.bf16.msra.mxu0 0
    %104 = vmatprep.subr.bf16.mxu0 0
    %105 = vmatpush1.bf16.msra.mxu0 0
    %106 = vmatprep.subr.bf16.mxu0 0
    %107 = vmatpush1.bf16.msra.mxu0 0
    %108 = vmatprep.subr.bf16.mxu0 0
    %109 = vmatpush1.bf16.msra.mxu0 0
    %110 = vmatprep.subr.bf16.mxu0 0
    %111 = vmatpush1.bf16.msra.mxu0 %v81
    %112 = vmatprep.subr.bf16.mxu0 0
    %113 = vmatpush2.bf16.msra.mxu0 0
    %114 = vmatprep.subr.bf16.mxu0 0
    %115 = vmatpush2.bf16.msra.mxu0 0
    %116 = vmatprep.subr.bf16.mxu0 0
    %117 = vmatpush2.bf16.msra.mxu0 0
    %118 = vmatprep.subr.bf16.mxu0 0
    %119 = vmatpush2.bf16.msra.mxu0 0
    %120 = vmatprep.subr.bf16.mxu0 0
    %121 = vmatpush2.bf16.msra.mxu0 0
    %122 = vmatprep.subr.bf16.mxu0 0
    %123 = vmatpush2.bf16.msra.mxu0 0
    %124 = vmatprep.subr.bf16.mxu0 0
    %125 = vmatpush2.bf16.msra.mxu0 0
    %126 = vmatprep.subr.bf16.mxu0 0
    %127 = vmatpush2.bf16.msra.mxu0 0
    %128 = vmatprep.mubr.bf16.mxu0 0
    %129 = vmatmul.mubr.bf16.gmra.mxu0 %v85
    %v130 = vpop.f32.mrf.mxu0
    %v131 = vadd.f32 %v55, %v130
    %v132 = vpop.f32.mrf.mxu0
    %v133 = vpop.f32.mrf.mxu0
    %v134 = vadd.f32 %v55, %v133
    %v135 = vpop.f32.mrf.mxu0
    %136 = vmatprep.mubr.bf16.mxu0 0
    %137 = vmatmul.mubr.bf16.gmra.mxu0 %v88
    %v138 = vpop.f32.mrf.mxu0
    %v139 = vadd.f32 %v55, %v138
    %v140 = vpop.f32.mrf.mxu0
    %v141 = vpop.f32.mrf.mxu0
    %v142 = vadd.f32 %v55, %v141
    %v143 = vpop.f32.mrf.mxu0
    %144 = vmatprep.mubr.bf16.mxu0 0
    %145 = vmatmul.mubr.bf16.gmra.mxu0 %v91
    %v146 = vpop.f32.mrf.mxu0
    %v147 = vadd.f32 %v55, %v146
    %v148 = vpop.f32.mrf.mxu0
    %v149 = vpop.f32.mrf.mxu0
    %v150 = vadd.f32 %v55, %v149
    %v151 = vpop.f32.mrf.mxu0
    %152 = vmatprep.mubr.bf16.mxu0 0
    %153 = vmatmul.mubr.bf16.gmra.mxu0 %v94
    %v154 = vpop.f32.mrf.mxu0
    %v155 = vadd.f32 %v55, %v154
    %v156 = vpop.f32.mrf.mxu0
    %v157 = vpop.f32.mrf.mxu0
    %v158 = vadd.f32 %v55, %v157
    %v159 = vpop.f32.mrf.mxu0
    %160 = vdwg.mxu0
    %v161 = vld [vmem:[%s3] sm:$0xf]
    %v162 = vld [vmem:[%s3 + $0x4] sm:$0xf]
    %v163 = vld [vmem:[%s3 + $0x8] sm:$0xf]
    %v164 = vld [vmem:[%s3 + $0xc] sm:$0xf]
    %v165 = vlaneseq
    %v166 = vand.u32 %v165, 127
    %vm167 = vcmp.lt.s32.totalorder %v166, 96
    %v168 = vsel %vm167, 0.5, 1.0
    %v169 = vsel %vm167, 0.5, 0.0
    %s170 = sld [smem:[#allocation2]]
    %p171 = scmp.ne.s32.totalorder %s170, 0
    %v176 = vunpack.c.l.b16 %v161
    %v177 = vunpack.c.l.b16 %v162
    %v178 = vunpack.c.l.b16 %v163
    %v179 = vunpack.c.l.b16 %v164
    %v180 = vpack.c.b16 %v177, %v176
    %v181 = vpack.c.b16 %v179, %v178
    %vm184 = vcmask 261120
    %v186 = vsel %vm184, 0, 0
    %188 = vmatprep.subr.bf16.mxu0 0
    %189 = vmatpush1.bf16.msra.mxu0 0
    %190 = vmatprep.subr.bf16.mxu0 0
    %191 = vmatpush1.bf16.msra.mxu0 0
    %192 = vmatprep.subr.bf16.mxu0 0
    %193 = vmatpush1.bf16.msra.mxu0 0
    %194 = vmatprep.subr.bf16.mxu0 0
    %195 = vmatpush1.bf16.msra.mxu0 0
    %196 = vmatprep.subr.bf16.mxu0 0
    %197 = vmatpush1.bf16.msra.mxu0 0
    %198 = vmatprep.subr.bf16.mxu0 0
    %199 = vmatpush1.bf16.msra.mxu0 0
    %200 = vmatprep.subr.bf16.mxu0 0
    %201 = vmatpush1.bf16.msra.mxu0 %v181
    %202 = vmatprep.subr.bf16.mxu0 0
    %203 = vmatpush1.bf16.msra.mxu0 %v180
    %204 = vmatprep.subr.bf16.mxu0 0
    %205 = vmatpush2.bf16.msra.mxu0 0
    %206 = vmatprep.subr.bf16.mxu0 0
    %207 = vmatpush2.bf16.msra.mxu0 0
    %208 = vmatprep.subr.bf16.mxu0 0
    %209 = vmatpush2.bf16.msra.mxu0 0
    %210 = vmatprep.subr.bf16.mxu0 0
    %211 = vmatpush2.bf16.msra.mxu0 0
    %212 = vmatprep.subr.bf16.mxu0 0
    %213 = vmatpush2.bf16.msra.mxu0 0
    %214 = vmatprep.subr.bf16.mxu0 0
    %215 = vmatpush2.bf16.msra.mxu0 0
    %216 = vmatprep.subr.bf16.mxu0 0
    %217 = vmatpush2.bf16.msra.mxu0 0
    %218 = vmatprep.subr.bf16.mxu0 0
    %219 = vmatpush2.bf16.msra.mxu0 0
    %220 = vmatprep.mubr.bf16.mxu0 0
    %221 = vmatmul.mubr.bf16.gmra.mxu0 %v186
    %v222 = vpop.f32.mrf.mxu0
    %v223 = vadd.f32 0.0, %v222
    %v224 = vpop.f32.mrf.mxu0
    %v225 = vpop.f32.mrf.mxu0
    %v226 = vpop.f32.mrf.mxu0
    %227 = vdwg.mxu0
    %v228 = vadd.f32 %v131, %v223
    %v229 = vmul.f32 %v228, %v168
    %v230 = vtanh.pop %v229
    %v231 = vmul.f32 %v230, %v168
    %v232 = vadd.f32 %v231, %v169
    %v233 = vmul.f32 %v232, 0.0
    %235 = vrot.lane.b32.xlu0 %v232, 64
    %v236 = vpop.permute.xlu0 %235
    %v238 = vmul.f32 %v232, %v236
    %240 = vrot.lane.b32.xlu0 %v238, 96
    %v241 = vpop.permute.xlu0 %240
    %v243 = vadd.f32 %v233, %v241
    %v244 = vtanh.pop %v243
    %246 = vrot.lane.b32.xlu0 %v244, 64
    %v247 = vpop.permute.xlu0 %246
    %v249 = vmul.f32 %v232, %v247
    %s250 = scalar_select %p171, 1, 0
    %v251 = vstv %s250
    %vm252 = vcmp.eq.s32.totalorder %v251, 1
    %v253 = vsel %vm252, %v243, 0.0
    %v254 = vsel %vm252, %v249, 0.0
    %s255 = sld [smem:[#allocation2 + $0x1]]
    %p256 = scmp.ne.s32.totalorder %s255, 0
    %v257 = vpack.c.bf16 %v254, %v254
    %259 = vrot.lane.b32.xlu0 %v257, 64
    %v260 = vpop.permute.xlu0 %259
    %v262 = vsel %vm184, %v260, 0
    %264 = vmatprep.subr.bf16.mxu0 0
    %265 = vmatpush1.bf16.msra.mxu0 0
    %266 = vmatprep.subr.bf16.mxu0 0
    %267 = vmatpush1.bf16.msra.mxu0 0
    %268 = vmatprep.subr.bf16.mxu0 0
    %269 = vmatpush1.bf16.msra.mxu0 0
    %270 = vmatprep.subr.bf16.mxu0 0
    %271 = vmatpush1.bf16.msra.mxu0 0
    %272 = vmatprep.subr.bf16.mxu0 0
    %273 = vmatpush1.bf16.msra.mxu0 0
    %274 = vmatprep.subr.bf16.mxu0 0
    %275 = vmatpush1.bf16.msra.mxu0 0
    %276 = vmatprep.subr.bf16.mxu0 0
    %277 = vmatpush1.bf16.msra.mxu0 %v181
    %278 = vmatprep.subr.bf16.mxu0 0
    %279 = vmatpush1.bf16.msra.mxu0 %v180
    %280 = vmatprep.subr.bf16.mxu0 0
    %281 = vmatpush2.bf16.msra.mxu0 0
    %282 = vmatprep.subr.bf16.mxu0 0
    %283 = vmatpush2.bf16.msra.mxu0 0
    %284 = vmatprep.subr.bf16.mxu0 0
    %285 = vmatpush2.bf16.msra.mxu0 0
    %286 = vmatprep.subr.bf16.mxu0 0
    %287 = vmatpush2.bf16.msra.mxu0 0
    %288 = vmatprep.subr.bf16.mxu0 0
    %289 = vmatpush2.bf16.msra.mxu0 0
    %290 = vmatprep.subr.bf16.mxu0 0
    %291 = vmatpush2.bf16.msra.mxu0 0
    %292 = vmatprep.subr.bf16.mxu0 0
    %293 = vmatpush2.bf16.msra.mxu0 0
    %294 = vmatprep.subr.bf16.mxu0 0
    %295 = vmatpush2.bf16.msra.mxu0 0
    %296 = vmatprep.mubr.bf16.mxu0 0
    %297 = vmatmul.mubr.bf16.gmra.mxu0 %v262
    %v298 = vpop.f32.mrf.mxu0
    %v299 = vadd.f32 0.0, %v298
    %v300 = vpop.f32.mrf.mxu0
    %v301 = vpop.f32.mrf.mxu0
    %v302 = vpop.f32.mrf.mxu0
    %303 = vdwg.mxu0
    %v304 = vadd.f32 %v134, %v299
    %v305 = vmul.f32 %v304, %v168
    %v306 = vtanh.pop %v305
    %v307 = vmul.f32 %v306, %v168
    %v308 = vadd.f32 %v307, %v169
    %v309 = vmul.f32 %v308, %v253
    %311 = vrot.lane.b32.xlu0 %v308, 64
    %v312 = vpop.permute.xlu0 %311
    %v314 = vmul.f32 %v308, %v312
    %316 = vrot.lane.b32.xlu0 %v314, 96
    %v317 = vpop.permute.xlu0 %316
    %v319 = vadd.f32 %v309, %v317
    %v320 = vtanh.pop %v319
    %322 = vrot.lane.b32.xlu0 %v320, 64
    %v323 = vpop.permute.xlu0 %322
    %v325 = vmul.f32 %v308, %v323
    %s326 = scalar_select %p256, 1, 0
    %v327 = vstv %s326
    %vm328 = vcmp.eq.s32.totalorder %v327, 1
    %v329 = vsel %vm328, %v319, %v253
    %v330 = vsel %vm328, %v325, %v254
    %s331 = sld [smem:[#allocation2 + $0x2]]
    %p332 = scmp.ne.s32.totalorder %s331, 0
    %v333 = vpack.c.bf16 %v330, %v330
    %335 = vrot.lane.b32.xlu0 %v333, 64
    %v336 = vpop.permute.xlu0 %335
    %v338 = vsel %vm184, %v336, 0
    %340 = vmatprep.subr.bf16.mxu0 0
    %341 = vmatpush1.bf16.msra.mxu0 0
    %342 = vmatprep.subr.bf16.mxu0 0
    %343 = vmatpush1.bf16.msra.mxu0 0
    %344 = vmatprep.subr.bf16.mxu0 0
    %345 = vmatpush1.bf16.msra.mxu0 0
    %346 = vmatprep.subr.bf16.mxu0 0
    %347 = vmatpush1.bf16.msra.mxu0 0
    %348 = vmatprep.subr.bf16.mxu0 0
    %349 = vmatpush1.bf16.msra.mxu0 0
    %350 = vmatprep.subr.bf16.mxu0 0
    %351 = vmatpush1.bf16.msra.mxu0 0
    %352 = vmatprep.subr.bf16.mxu0 0
    %353 = vmatpush1.bf16.msra.mxu0 %v181
    %354 = vmatprep.subr.bf16.mxu0 0
    %355 = vmatpush1.bf16.msra.mxu0 %v180
    %356 = vmatprep.subr.bf16.mxu0 0
    %357 = vmatpush2.bf16.msra.mxu0 0
    %358 = vmatprep.subr.bf16.mxu0 0
    %359 = vmatpush2.bf16.msra.mxu0 0
    %360 = vmatprep.subr.bf16.mxu0 0
    %361 = vmatpush2.bf16.msra.mxu0 0
    %362 = vmatprep.subr.bf16.mxu0 0
    %363 = vmatpush2.bf16.msra.mxu0 0
    %364 = vmatprep.subr.bf16.mxu0 0
    %365 = vmatpush2.bf16.msra.mxu0 0
    %366 = vmatprep.subr.bf16.mxu0 0
    %367 = vmatpush2.bf16.msra.mxu0 0
    %368 = vmatprep.subr.bf16.mxu0 0
    %369 = vmatpush2.bf16.msra.mxu0 0
    %370 = vmatprep.subr.bf16.mxu0 0
    %371 = vmatpush2.bf16.msra.mxu0 0
    %372 = vmatprep.mubr.bf16.mxu0 0
    %373 = vmatmul.mubr.bf16.gmra.mxu0 %v338
    %v374 = vpop.f32.mrf.mxu0
    %v375 = vadd.f32 0.0, %v374
    %v376 = vpop.f32.mrf.mxu0
    %v377 = vpop.f32.mrf.mxu0
    %v378 = vpop.f32.mrf.mxu0
    %379 = vdwg.mxu0
    %v380 = vadd.f32 %v139, %v375
    %v381 = vmul.f32 %v380, %v168
    %v382 = vtanh.pop %v381
    %v383 = vmul.f32 %v382, %v168
    %v384 = vadd.f32 %v383, %v169
    %v385 = vmul.f32 %v384, %v329
    %387 = vrot.lane.b32.xlu0 %v384, 64
    %v388 = vpop.permute.xlu0 %387
    %v390 = vmul.f32 %v384, %v388
    %392 = vrot.lane.b32.xlu0 %v390, 96
    %v393 = vpop.permute.xlu0 %392
    %v395 = vadd.f32 %v385, %v393
    %v396 = vtanh.pop %v395
    %398 = vrot.lane.b32.xlu0 %v396, 64
    %v399 = vpop.permute.xlu0 %398
    %v401 = vmul.f32 %v384, %v399
    %s402 = scalar_select %p332, 1, 0
    %v403 = vstv %s402
    %vm404 = vcmp.eq.s32.totalorder %v403, 1
    %v405 = vsel %vm404, %v395, %v329
    %v406 = vsel %vm404, %v401, %v330
    %s407 = sld [smem:[#allocation2 + $0x3]]
    %p408 = scmp.ne.s32.totalorder %s407, 0
    %v409 = vpack.c.bf16 %v406, %v406
    %411 = vrot.lane.b32.xlu0 %v409, 64
    %v412 = vpop.permute.xlu0 %411
    %v414 = vsel %vm184, %v412, 0
    %416 = vmatprep.subr.bf16.mxu0 0
    %417 = vmatpush1.bf16.msra.mxu0 0
    %418 = vmatprep.subr.bf16.mxu0 0
    %419 = vmatpush1.bf16.msra.mxu0 0
    %420 = vmatprep.subr.bf16.mxu0 0
    %421 = vmatpush1.bf16.msra.mxu0 0
    %422 = vmatprep.subr.bf16.mxu0 0
    %423 = vmatpush1.bf16.msra.mxu0 0
    %424 = vmatprep.subr.bf16.mxu0 0
    %425 = vmatpush1.bf16.msra.mxu0 0
    %426 = vmatprep.subr.bf16.mxu0 0
    %427 = vmatpush1.bf16.msra.mxu0 0
    %428 = vmatprep.subr.bf16.mxu0 0
    %429 = vmatpush1.bf16.msra.mxu0 %v181
    %430 = vmatprep.subr.bf16.mxu0 0
    %431 = vmatpush1.bf16.msra.mxu0 %v180
    %432 = vmatprep.subr.bf16.mxu0 0
    %433 = vmatpush2.bf16.msra.mxu0 0
    %434 = vmatprep.subr.bf16.mxu0 0
    %435 = vmatpush2.bf16.msra.mxu0 0
    %436 = vmatprep.subr.bf16.mxu0 0
    %437 = vmatpush2.bf16.msra.mxu0 0
    %438 = vmatprep.subr.bf16.mxu0 0
    %439 = vmatpush2.bf16.msra.mxu0 0
    %440 = vmatprep.subr.bf16.mxu0 0
    %441 = vmatpush2.bf16.msra.mxu0 0
    %442 = vmatprep.subr.bf16.mxu0 0
    %443 = vmatpush2.bf16.msra.mxu0 0
    %444 = vmatprep.subr.bf16.mxu0 0
    %445 = vmatpush2.bf16.msra.mxu0 0
    %446 = vmatprep.subr.bf16.mxu0 0
    %447 = vmatpush2.bf16.msra.mxu0 0
    %448 = vmatprep.mubr.bf16.mxu0 0
    %449 = vmatmul.mubr.bf16.gmra.mxu0 %v414
    %v450 = vpop.f32.mrf.mxu0
    %v451 = vadd.f32 0.0, %v450
    %v452 = vpop.f32.mrf.mxu0
    %v453 = vpop.f32.mrf.mxu0
    %v454 = vpop.f32.mrf.mxu0
    %455 = vdwg.mxu0
    %v456 = vadd.f32 %v142, %v451
    %v457 = vmul.f32 %v456, %v168
    %v458 = vtanh.pop %v457
    %v459 = vmul.f32 %v458, %v168
    %v460 = vadd.f32 %v459, %v169
    %v461 = vmul.f32 %v460, %v405
    %463 = vrot.lane.b32.xlu0 %v460, 64
    %v464 = vpop.permute.xlu0 %463
    %v466 = vmul.f32 %v460, %v464
    %468 = vrot.lane.b32.xlu0 %v466, 96
    %v469 = vpop.permute.xlu0 %468
    %v471 = vadd.f32 %v461, %v469
    %v472 = vtanh.pop %v471
    %474 = vrot.lane.b32.xlu0 %v472, 64
    %v475 = vpop.permute.xlu0 %474
    %v477 = vmul.f32 %v460, %v475
    %s478 = scalar_select %p408, 1, 0
    %v479 = vstv %s478
    %vm480 = vcmp.eq.s32.totalorder %v479, 1
    %v481 = vsel %vm480, %v471, %v405
    %v482 = vsel %vm480, %v477, %v406
    %s483 = sld [smem:[#allocation2 + $0x4]]
    %p484 = scmp.ne.s32.totalorder %s483, 0
    %v485 = vpack.c.bf16 %v482, %v482
    %487 = vrot.lane.b32.xlu0 %v485, 64
    %v488 = vpop.permute.xlu0 %487
    %v490 = vsel %vm184, %v488, 0
    %492 = vmatprep.subr.bf16.mxu0 0
    %493 = vmatpush1.bf16.msra.mxu0 0
    %494 = vmatprep.subr.bf16.mxu0 0
    %495 = vmatpush1.bf16.msra.mxu0 0
    %496 = vmatprep.subr.bf16.mxu0 0
    %497 = vmatpush1.bf16.msra.mxu0 0
    %498 = vmatprep.subr.bf16.mxu0 0
    %499 = vmatpush1.bf16.msra.mxu0 0
    %500 = vmatprep.subr.bf16.mxu0 0
    %501 = vmatpush1.bf16.msra.mxu0 0
    %502 = vmatprep.subr.bf16.mxu0 0
    %503 = vmatpush1.bf16.msra.mxu0 0
    %504 = vmatprep.subr.bf16.mxu0 0
    %505 = vmatpush1.bf16.msra.mxu0 %v181
    %506 = vmatprep.subr.bf16.mxu0 0
    %507 = vmatpush1.bf16.msra.mxu0 %v180
    %508 = vmatprep.subr.bf16.mxu0 0
    %509 = vmatpush2.bf16.msra.mxu0 0
    %510 = vmatprep.subr.bf16.mxu0 0
    %511 = vmatpush2.bf16.msra.mxu0 0
    %512 = vmatprep.subr.bf16.mxu0 0
    %513 = vmatpush2.bf16.msra.mxu0 0
    %514 = vmatprep.subr.bf16.mxu0 0
    %515 = vmatpush2.bf16.msra.mxu0 0
    %516 = vmatprep.subr.bf16.mxu0 0
    %517 = vmatpush2.bf16.msra.mxu0 0
    %518 = vmatprep.subr.bf16.mxu0 0
    %519 = vmatpush2.bf16.msra.mxu0 0
    %520 = vmatprep.subr.bf16.mxu0 0
    %521 = vmatpush2.bf16.msra.mxu0 0
    %522 = vmatprep.subr.bf16.mxu0 0
    %523 = vmatpush2.bf16.msra.mxu0 0
    %524 = vmatprep.mubr.bf16.mxu0 0
    %525 = vmatmul.mubr.bf16.gmra.mxu0 %v490
    %v526 = vpop.f32.mrf.mxu0
    %v527 = vadd.f32 0.0, %v526
    %v528 = vpop.f32.mrf.mxu0
    %v529 = vpop.f32.mrf.mxu0
    %v530 = vpop.f32.mrf.mxu0
    %531 = vdwg.mxu0
    %v532 = vadd.f32 %v147, %v527
    %v533 = vmul.f32 %v532, %v168
    %v534 = vtanh.pop %v533
    %v535 = vmul.f32 %v534, %v168
    %v536 = vadd.f32 %v535, %v169
    %v537 = vmul.f32 %v536, %v481
    %539 = vrot.lane.b32.xlu0 %v536, 64
    %v540 = vpop.permute.xlu0 %539
    %v542 = vmul.f32 %v536, %v540
    %544 = vrot.lane.b32.xlu0 %v542, 96
    %v545 = vpop.permute.xlu0 %544
    %v547 = vadd.f32 %v537, %v545
    %v548 = vtanh.pop %v547
    %550 = vrot.lane.b32.xlu0 %v548, 64
    %v551 = vpop.permute.xlu0 %550
    %v553 = vmul.f32 %v536, %v551
    %s554 = scalar_select %p484, 1, 0
    %v555 = vstv %s554
    %vm556 = vcmp.eq.s32.totalorder %v555, 1
    %v557 = vsel %vm556, %v547, %v481
    %v558 = vsel %vm556, %v553, %v482
    %s559 = sld [smem:[#allocation2 + $0x5]]
    %p560 = scmp.ne.s32.totalorder %s559, 0
    %v561 = vpack.c.bf16 %v558, %v558
    %563 = vrot.lane.b32.xlu0 %v561, 64
    %v564 = vpop.permute.xlu0 %563
    %v566 = vsel %vm184, %v564, 0
    %568 = vmatprep.subr.bf16.mxu0 0
    %569 = vmatpush1.bf16.msra.mxu0 0
    %570 = vmatprep.subr.bf16.mxu0 0
    %571 = vmatpush1.bf16.msra.mxu0 0
    %572 = vmatprep.subr.bf16.mxu0 0
    %573 = vmatpush1.bf16.msra.mxu0 0
    %574 = vmatprep.subr.bf16.mxu0 0
    %575 = vmatpush1.bf16.msra.mxu0 0
    %576 = vmatprep.subr.bf16.mxu0 0
    %577 = vmatpush1.bf16.msra.mxu0 0
    %578 = vmatprep.subr.bf16.mxu0 0
    %579 = vmatpush1.bf16.msra.mxu0 0
    %580 = vmatprep.subr.bf16.mxu0 0
    %581 = vmatpush1.bf16.msra.mxu0 %v181
    %582 = vmatprep.subr.bf16.mxu0 0
    %583 = vmatpush1.bf16.msra.mxu0 %v180
    %584 = vmatprep.subr.bf16.mxu0 0
    %585 = vmatpush2.bf16.msra.mxu0 0
    %586 = vmatprep.subr.bf16.mxu0 0
    %587 = vmatpush2.bf16.msra.mxu0 0
    %588 = vmatprep.subr.bf16.mxu0 0
    %589 = vmatpush2.bf16.msra.mxu0 0
    %590 = vmatprep.subr.bf16.mxu0 0
    %591 = vmatpush2.bf16.msra.mxu0 0
    %592 = vmatprep.subr.bf16.mxu0 0
    %593 = vmatpush2.bf16.msra.mxu0 0
    %594 = vmatprep.subr.bf16.mxu0 0
    %595 = vmatpush2.bf16.msra.mxu0 0
    %596 = vmatprep.subr.bf16.mxu0 0
    %597 = vmatpush2.bf16.msra.mxu0 0
    %598 = vmatprep.subr.bf16.mxu0 0
    %599 = vmatpush2.bf16.msra.mxu0 0
    %600 = vmatprep.mubr.bf16.mxu0 0
    %601 = vmatmul.mubr.bf16.gmra.mxu0 %v566
    %v602 = vpop.f32.mrf.mxu0
    %v603 = vadd.f32 0.0, %v602
    %v604 = vpop.f32.mrf.mxu0
    %v605 = vpop.f32.mrf.mxu0
    %v606 = vpop.f32.mrf.mxu0
    %607 = vdwg.mxu0
    %v608 = vadd.f32 %v150, %v603
    %v609 = vmul.f32 %v608, %v168
    %v610 = vtanh.pop %v609
    %v611 = vmul.f32 %v610, %v168
    %v612 = vadd.f32 %v611, %v169
    %v613 = vmul.f32 %v612, %v557
    %615 = vrot.lane.b32.xlu0 %v612, 64
    %v616 = vpop.permute.xlu0 %615
    %v618 = vmul.f32 %v612, %v616
    %620 = vrot.lane.b32.xlu0 %v618, 96
    %v621 = vpop.permute.xlu0 %620
    %v623 = vadd.f32 %v613, %v621
    %v624 = vtanh.pop %v623
    %626 = vrot.lane.b32.xlu0 %v624, 64
    %v627 = vpop.permute.xlu0 %626
    %v629 = vmul.f32 %v612, %v627
    %s630 = scalar_select %p560, 1, 0
    %v631 = vstv %s630
    %vm632 = vcmp.eq.s32.totalorder %v631, 1
    %v633 = vsel %vm632, %v623, %v557
    %v634 = vsel %vm632, %v629, %v558
    %s635 = sld [smem:[#allocation2 + $0x6]]
    %p636 = scmp.ne.s32.totalorder %s635, 0
    %v637 = vpack.c.bf16 %v634, %v634
    %639 = vrot.lane.b32.xlu0 %v637, 64
    %v640 = vpop.permute.xlu0 %639
    %v642 = vsel %vm184, %v640, 0
    %644 = vmatprep.subr.bf16.mxu0 0
    %645 = vmatpush1.bf16.msra.mxu0 0
    %646 = vmatprep.subr.bf16.mxu0 0
    %647 = vmatpush1.bf16.msra.mxu0 0
    %648 = vmatprep.subr.bf16.mxu0 0
    %649 = vmatpush1.bf16.msra.mxu0 0
    %650 = vmatprep.subr.bf16.mxu0 0
    %651 = vmatpush1.bf16.msra.mxu0 0
    %652 = vmatprep.subr.bf16.mxu0 0
    %653 = vmatpush1.bf16.msra.mxu0 0
    %654 = vmatprep.subr.bf16.mxu0 0
    %655 = vmatpush1.bf16.msra.mxu0 0
    %656 = vmatprep.subr.bf16.mxu0 0
    %657 = vmatpush1.bf16.msra.mxu0 %v181
    %658 = vmatprep.subr.bf16.mxu0 0
    %659 = vmatpush1.bf16.msra.mxu0 %v180
    %660 = vmatprep.subr.bf16.mxu0 0
    %661 = vmatpush2.bf16.msra.mxu0 0
    %662 = vmatprep.subr.bf16.mxu0 0
    %663 = vmatpush2.bf16.msra.mxu0 0
    %664 = vmatprep.subr.bf16.mxu0 0
    %665 = vmatpush2.bf16.msra.mxu0 0
    %666 = vmatprep.subr.bf16.mxu0 0
    %667 = vmatpush2.bf16.msra.mxu0 0
    %668 = vmatprep.subr.bf16.mxu0 0
    %669 = vmatpush2.bf16.msra.mxu0 0
    %670 = vmatprep.subr.bf16.mxu0 0
    %671 = vmatpush2.bf16.msra.mxu0 0
    %672 = vmatprep.subr.bf16.mxu0 0
    %673 = vmatpush2.bf16.msra.mxu0 0
    %674 = vmatprep.subr.bf16.mxu0 0
    %675 = vmatpush2.bf16.msra.mxu0 0
    %676 = vmatprep.mubr.bf16.mxu0 0
    %677 = vmatmul.mubr.bf16.gmra.mxu0 %v642
    %v678 = vpop.f32.mrf.mxu0
    %v679 = vadd.f32 0.0, %v678
    %v680 = vpop.f32.mrf.mxu0
    %v681 = vpop.f32.mrf.mxu0
    %v682 = vpop.f32.mrf.mxu0
    %683 = vdwg.mxu0
    %v684 = vadd.f32 %v155, %v679
    %v685 = vmul.f32 %v684, %v168
    %v686 = vtanh.pop %v685
    %v687 = vmul.f32 %v686, %v168
    %v688 = vadd.f32 %v687, %v169
    %v689 = vmul.f32 %v688, %v633
    %691 = vrot.lane.b32.xlu0 %v688, 64
    %v692 = vpop.permute.xlu0 %691
    %v694 = vmul.f32 %v688, %v692
    %696 = vrot.lane.b32.xlu0 %v694, 96
    %v697 = vpop.permute.xlu0 %696
    %v699 = vadd.f32 %v689, %v697
    %v700 = vtanh.pop %v699
    %702 = vrot.lane.b32.xlu0 %v700, 64
    %v703 = vpop.permute.xlu0 %702
    %v705 = vmul.f32 %v688, %v703
    %s706 = scalar_select %p636, 1, 0
    %v707 = vstv %s706
    %vm708 = vcmp.eq.s32.totalorder %v707, 1
    %v709 = vsel %vm708, %v699, %v633
    %v710 = vsel %vm708, %v705, %v634
    %s711 = sld [smem:[#allocation2 + $0x7]]
    %p712 = scmp.ne.s32.totalorder %s711, 0
    %v713 = vpack.c.bf16 %v710, %v710
    %715 = vrot.lane.b32.xlu0 %v713, 64
    %v716 = vpop.permute.xlu0 %715
    %v718 = vsel %vm184, %v716, 0
    %720 = vmatprep.subr.bf16.mxu0 0
    %721 = vmatpush1.bf16.msra.mxu0 0
    %722 = vmatprep.subr.bf16.mxu0 0
    %723 = vmatpush1.bf16.msra.mxu0 0
    %724 = vmatprep.subr.bf16.mxu0 0
    %725 = vmatpush1.bf16.msra.mxu0 0
    %726 = vmatprep.subr.bf16.mxu0 0
    %727 = vmatpush1.bf16.msra.mxu0 0
    %728 = vmatprep.subr.bf16.mxu0 0
    %729 = vmatpush1.bf16.msra.mxu0 0
    %730 = vmatprep.subr.bf16.mxu0 0
    %731 = vmatpush1.bf16.msra.mxu0 0
    %732 = vmatprep.subr.bf16.mxu0 0
    %733 = vmatpush1.bf16.msra.mxu0 %v181
    %734 = vmatprep.subr.bf16.mxu0 0
    %735 = vmatpush1.bf16.msra.mxu0 %v180
    %736 = vmatprep.subr.bf16.mxu0 0
    %737 = vmatpush2.bf16.msra.mxu0 0
    %738 = vmatprep.subr.bf16.mxu0 0
    %739 = vmatpush2.bf16.msra.mxu0 0
    %740 = vmatprep.subr.bf16.mxu0 0
    %741 = vmatpush2.bf16.msra.mxu0 0
    %742 = vmatprep.subr.bf16.mxu0 0
    %743 = vmatpush2.bf16.msra.mxu0 0
    %744 = vmatprep.subr.bf16.mxu0 0
    %745 = vmatpush2.bf16.msra.mxu0 0
    %746 = vmatprep.subr.bf16.mxu0 0
    %747 = vmatpush2.bf16.msra.mxu0 0
    %748 = vmatprep.subr.bf16.mxu0 0
    %749 = vmatpush2.bf16.msra.mxu0 0
    %750 = vmatprep.subr.bf16.mxu0 0
    %751 = vmatpush2.bf16.msra.mxu0 0
    %752 = vmatprep.mubr.bf16.mxu0 0
    %753 = vmatmul.mubr.bf16.gmra.mxu0 %v718
    %v754 = vpop.f32.mrf.mxu0
    %v755 = vadd.f32 0.0, %v754
    %v756 = vpop.f32.mrf.mxu0
    %v757 = vpop.f32.mrf.mxu0
    %v758 = vpop.f32.mrf.mxu0
    %759 = vdwg.mxu0
    %v760 = vadd.f32 %v158, %v755
    %v761 = vmul.f32 %v760, %v168
    %v762 = vtanh.pop %v761
    %v763 = vmul.f32 %v762, %v168
    %v764 = vadd.f32 %v763, %v169
    %v765 = vmul.f32 %v764, %v709
    %767 = vrot.lane.b32.xlu0 %v764, 64
    %v768 = vpop.permute.xlu0 %767
    %v770 = vmul.f32 %v764, %v768
    %772 = vrot.lane.b32.xlu0 %v770, 96
    %v773 = vpop.permute.xlu0 %772
    %v775 = vadd.f32 %v765, %v773
    %v776 = vtanh.pop %v775
    %778 = vrot.lane.b32.xlu0 %v776, 64
    %v779 = vpop.permute.xlu0 %778
    %v781 = vmul.f32 %v764, %v779
    %s782 = scalar_select %p712, 1, 0
    %v783 = vstv %s782
    %vm784 = vcmp.eq.s32.totalorder %v783, 1
    %v785 = vsel %vm784, %v781, %v710
    %v786 = vld [vmem:[%s5] sm:$0xff]
    %v787 = vld [vmem:[%s5 + $0x8] sm:$0xff]
    %v788 = vld [vmem:[%s5 + $0x10] sm:$0xff]
    %v789 = vld [vmem:[%s5 + $0x18] sm:$0xff]
    %v790 = vld [vmem:[%s6] sm:$0x1]
    %v792 = vlaneseq
    %v793 = vshrl.u32 %v792, 7
    %v794 = vsub.s32 0, %v793
    %v795 = vrot.slane %v790, %v794
    %798 = vrot.lane.b32.xlu0 %v785, 64
    %v799 = vpop.permute.xlu0 %798
    %v800 = vsel %vm184, %v799, 0
    %802 = vmatprep.subr.mxu0 0.0
    %803 = vmatpush1.msra.mxu0 0.0
    %804 = vmatprep.subr.mxu0 0.0
    %805 = vmatpush1.msra.mxu0 0.0
    %806 = vmatprep.subr.mxu0 0.0
    %807 = vmatpush1.msra.mxu0 0.0
    %808 = vmatprep.subr.mxu0 0.0
    %809 = vmatpush1.msra.mxu0 0.0
    %810 = vmatprep.subr.mxu0 0.0
    %811 = vmatpush1.msra.mxu0 0.0
    %812 = vmatprep.subr.mxu0 0.0
    %813 = vmatpush1.msra.mxu0 0.0
    %814 = vmatprep.subr.mxu0 0.0
    %815 = vmatpush1.msra.mxu0 0.0
    %816 = vmatprep.subr.mxu0 0.0
    %817 = vmatpush1.msra.mxu0 0.0
    %818 = vmatprep.subr.mxu0 0.0
    %819 = vmatpush1.msra.mxu0 0.0
    %820 = vmatprep.subr.mxu0 0.0
    %821 = vmatpush1.msra.mxu0 0.0
    %822 = vmatprep.subr.mxu0 0.0
    %823 = vmatpush1.msra.mxu0 0.0
    %824 = vmatprep.subr.mxu0 0.0
    %825 = vmatpush1.msra.mxu0 0.0
    %826 = vmatprep.subr.mxu0 0.0
    %827 = vmatpush1.msra.mxu0 %v789
    %828 = vmatprep.subr.mxu0 0.0
    %829 = vmatpush1.msra.mxu0 %v788
    %830 = vmatprep.subr.mxu0 0.0
    %831 = vmatpush1.msra.mxu0 %v787
    %832 = vmatprep.subr.mxu0 0.0
    %833 = vmatpush1.msra.mxu0 %v786
    %834 = vmatprep.subr.mxu0 0.0
    %835 = vmatpush2.msra.mxu0 0.0
    %836 = vmatprep.subr.mxu0 0.0
    %837 = vmatpush2.msra.mxu0 0.0
    %838 = vmatprep.subr.mxu0 0.0
    %839 = vmatpush2.msra.mxu0 0.0
    %840 = vmatprep.subr.mxu0 0.0
    %841 = vmatpush2.msra.mxu0 0.0
    %842 = vmatprep.subr.mxu0 0.0
    %843 = vmatpush2.msra.mxu0 0.0
    %844 = vmatprep.subr.mxu0 0.0
    %845 = vmatpush2.msra.mxu0 0.0
    %846 = vmatprep.subr.mxu0 0.0
    %847 = vmatpush2.msra.mxu0 0.0
    %848 = vmatprep.subr.mxu0 0.0
    %849 = vmatpush2.msra.mxu0 0.0
    %850 = vmatprep.subr.mxu0 0.0
    %851 = vmatpush2.msra.mxu0 0.0
    %852 = vmatprep.subr.mxu0 0.0
    %853 = vmatpush2.msra.mxu0 0.0
    %854 = vmatprep.subr.mxu0 0.0
    %855 = vmatpush2.msra.mxu0 0.0
    %856 = vmatprep.subr.mxu0 0.0
    %857 = vmatpush2.msra.mxu0 0.0
    %858 = vmatprep.subr.mxu0 0.0
    %859 = vmatpush2.msra.mxu0 0.0
    %860 = vmatprep.subr.mxu0 0.0
    %861 = vmatpush2.msra.mxu0 0.0
    %862 = vmatprep.subr.mxu0 0.0
    %863 = vmatpush2.msra.mxu0 0.0
    %864 = vmatprep.subr.mxu0 0.0
    %865 = vmatpush2.msra.mxu0 0.0
    %866 = vmatprep.mubr.f32.mxu0 0.0
    %867 = vmatmul.mubr.f32.gmra.mxu0 %v800
    %v868 = vpop.f32.mrf.mxu0
    %v869 = vadd.f32 %v795, %v868
    %v870 = vpop.f32.mrf.mxu0
    %871 = vdwg.mxu0
    %872 = vmax.xlane.f32.xlu0 %v869
    %v873 = vpop.xlane.xlu0 %872
    %v874 = vsub.f32 %v869, %v873
    %v875 = vmul.f32 %v874, 1.442695
    %v876 = vpow.pop %v875
    %877 = vadd.xlane.f32.xlu0 %v876
    %v878 = vpop.xlane.xlu0 %877
    %v879 = vrcp.pop %v878
    %v880 = vmul.f32 %v876, %v879
    %881 = vst [vmem:[%s7] sm:$0xff] %v880
    // Predicated region
    $region34: #{lstm_forward.1} parent=1 // pred_check
      _
    $region35: #{lstm_forward.1} parent=1 // pred_check_branch
      %883 = sbr.rel (0) target = $region37
    $region36: #{lstm_forward.1} parent=1 // pred_region
      _
    $region37: #{lstm_forward.1} parent=1 // pred_fallthru
      _
    // Predicated region
    $region38: #{lstm_forward.1} parent=1 // pred_check
      _
    $region39: #{lstm_forward.1} parent=1 // pred_check_branch
      %885 = sbr.rel (0) target = $region41
    $region40: #{lstm_forward.1} parent=1 // pred_region
      _
    $region41: #{lstm_forward.1} parent=1 // pred_fallthru
      _
    %886 = vsyncpa [#allocation3], 1

</llo_original>
